<compile_context>
chip_gen: v5e
topology: v5e:2x2
jax: 0.10.0
libtpu: 0.0.40
codegen_flags: <defaults>
</compile_context>

<pallas_src>
import jax
import jax.numpy as jnp
from jax.experimental import pallas as pl
from jax.experimental.pallas import tpu as pltpu

OBS_DIM = 2       # env.observation_space.shape[0] for MountainCar-v0
N_ACTIONS = 3     # env.action_space.n for MountainCar-v0
D = 128           # hidden width
OUT_PAD = 8       # N_ACTIONS rounded up to the f32 sublane (narrow store)


def net_kernel(x_ref, w1_ref, b1_ref, w2_ref, b2_ref, o_ref):
    # x_ref:  [bt, OBS_DIM]
    # w1_ref: [OBS_DIM, D], b1_ref: [1, D]
    # w2_ref: [D, OUT_PAD], b2_ref: [1, OUT_PAD]  (zero-padded past N_ACTIONS)
    # o_ref:  [bt, OUT_PAD]

    # --- layer 1 on the VPU: K=2 is far too small for the MXU --------------
    x0 = x_ref[:, 0:1]          # [bt, 1]
    x1 = x_ref[:, 1:2]          # [bt, 1]
    h = x0 * w1_ref[0:1, :] + x1 * w1_ref[1:2, :] + b1_ref[...]   # [bt, D]
    h = jnp.tanh(h)             # EUP

    # --- layer 2 on the MXU (N=8; MXU has slack), narrow f32 output --------
    # (bf16 cast of h/w2 is possible on v6e/v7x but unnecessary at D=128.)
    y = jnp.dot(h, w2_ref[...], preferred_element_type=jnp.float32)  # [bt, OUT_PAD]
    o_ref[...] = (y + b2_ref[...]).astype(o_ref.dtype)


def prepare_params(w1, b1, w2, b2):
    """One-time setup: zero-pad layer-2 params to OUT_PAD columns.

    Call this once when the network is built / weights are updated, NOT per
    forward call — keeps the per-call path free of extra XLA padding ops.
    """
    w2p = jnp.pad(w2, ((0, 0), (0, OUT_PAD - w2.shape[1])))
    b2p = jnp.pad(b2, ((0, 0), (0, OUT_PAD - b2.shape[1])))
    return w1, b1, w2p, b2p


def _pick_tile(B, b_tile):
    """Batch tile: multiple of 8, capped so the grid has >=2 steps (v7x 2 TCs)."""
    B8 = ((B + 7) // 8) * 8
    if B8 < 16:
        return 8
    half = ((B8 // 2 + 7) // 8) * 8       # ceil(B8/2) rounded up to 8
    bt = min(b_tile, half)
    return max(8, (bt // 8) * 8)


def net_forward(x, w1, b1, w2p, b2p, *, b_tile=4096):
    """x: [B, OBS_DIM] f32, pre-padded params from prepare_params()
    -> [B, N_ACTIONS] f32 (matches torch Net.forward)."""
    assert w2p.shape == (D, OUT_PAD) and b2p.shape == (1, OUT_PAD), \
        "pass params through prepare_params() once, outside the hot loop"
    B = x.shape[0]

    bt = _pick_tile(B, b_tile)
    B_pad = ((B + bt - 1) // bt) * bt
    padded = B_pad != B
    if padded:
        x = jnp.pad(x, ((0, B_pad - B), (0, 0)))

    num_tiles = B_pad // bt

    out = pl.pallas_call(
        net_kernel,
        out_shape=jax.ShapeDtypeStruct((B_pad, OUT_PAD), jnp.float32),
        grid=(num_tiles,),
        in_specs=[
            # x: one batch tile per grid step (pipelined, double-buffered).
            pl.BlockSpec((bt, OBS_DIM), lambda i: (i, 0)),
            # Weights/biases: constant block index -> stay VMEM-resident.
            pl.BlockSpec((OBS_DIM, D), lambda i: (0, 0)),
            pl.BlockSpec((1, D), lambda i: (0, 0)),
            pl.BlockSpec((D, OUT_PAD), lambda i: (0, 0)),
            pl.BlockSpec((1, OUT_PAD), lambda i: (0, 0)),
        ],
        out_specs=pl.BlockSpec((bt, OUT_PAD), lambda i: (i, 0)),
        compiler_params=pltpu.CompilerParams(
            # Batch axis is independent -> parallel (sharded across v7x's 2 TCs).
            dimension_semantics=("parallel",)),
    )(x, w1, b1, w2p, b2p)

    if padded:
        out = out[:B]
    # Column trim 8 -> 3 for exact nn.Linear output shape; a fused consumer
    # (e.g. argmax over Q-values) could take the (B, 8) result directly since
    # the padded columns are exactly zero.
    return out[:, :N_ACTIONS]


def init_params(key):
    # PyTorch-Linear-style uniform(-1/sqrt(fan_in), +1/sqrt(fan_in)) init.
    k1, k2, k3, k4 = jax.random.split(key, 4)
    lim1 = 1.0 / jnp.sqrt(jnp.float32(OBS_DIM))
    lim2 = 1.0 / jnp.sqrt(jnp.float32(D))
    w1 = jax.random.uniform(k1, (OBS_DIM, D), jnp.float32, -lim1, lim1)
    b1 = jax.random.uniform(k2, (1, D), jnp.float32, -lim1, lim1)
    w2 = jax.random.uniform(k3, (D, N_ACTIONS), jnp.float32, -lim2, lim2)
    b2 = jax.random.uniform(k4, (1, N_ACTIONS), jnp.float32, -lim2, lim2)
    return w1, b1, w2, b2


def reference_forward(x, w1, b1, w2, b2):
    return jnp.tanh(x @ w1 + b1) @ w2 + b2


if __name__ == "__main__":
    key = jax.random.PRNGKey(0)
    kx, kp = jax.random.split(key)

    w1, b1, w2, b2 = init_params(kp)
    # One-time padding, hoisted out of the forward path.
    w1p_, b1p_, w2p, b2p = prepare_params(w1, b1, w2, b2)

    # Small acting-path batch (launch-overhead dominated; correctness check).
    B = 8
    x = jax.random.normal(kx, (B, OBS_DIM), jnp.float32)
    out = jax.block_until_ready(net_forward(x, w1p_, b1p_, w2p, b2p))
    ref = reference_forward(x, w1, b1, w2, b2)
    assert out.shape == (B, N_ACTIONS)
    assert jnp.allclose(out, ref, atol=1e-5, rtol=1e-5)

    # DQN-style batch: multiple of the tile -> no padding, no row slice, 2 grid steps.
    B1 = 256
    x1 = jax.random.normal(kx, (B1, OBS_DIM), jnp.float32)
    out1 = jax.block_until_ready(net_forward(x1, w1p_, b1p_, w2p, b2p))
    ref1 = reference_forward(x1, w1, b1, w2, b2)
    assert out1.shape == (B1, N_ACTIONS)
    assert jnp.allclose(out1, ref1, atol=1e-5, rtol=1e-5)

    # Non-multiple-of-tile batch to cover the grid/padding path.
    B2 = 1000
    x2 = jax.random.normal(kx, (B2, OBS_DIM), jnp.float32)
    out2 = jax.block_until_ready(net_forward(x2, w1p_, b1p_, w2p, b2p))
    ref2 = reference_forward(x2, w1, b1, w2, b2)
    assert out2.shape == (B2, N_ACTIONS)
    assert jnp.allclose(out2, ref2, atol=1e-5, rtol=1e-5)

    print("KERNEL_OK")
</pallas_src>

<mosaic_0001>
module attributes {stable_mosaic.version = 11 : i64} {
  func.func @net_kernel(%arg0: i32, %arg1: memref<8x2xf32, #tpu.memory_space<vmem>>, %arg2: memref<2x128xf32, #tpu.memory_space<vmem>>, %arg3: memref<1x128xf32, #tpu.memory_space<vmem>>, %arg4: memref<128x8xf32, #tpu.memory_space<vmem>>, %arg5: memref<1x8xf32, #tpu.memory_space<vmem>>, %arg6: memref<8x8xf32, #tpu.memory_space<vmem>>) attributes {dimension_semantics = [#tpu.dimension_semantics<parallel>], iteration_bounds = array<i64: 1>, scalar_prefetch = 0 : i64, scratch_operands = 0 : i64, tpu.core_type = #tpu.core_type<tc>, window_params = [{transform_indices = @transform_0, window_bounds = array<i64: 8, 2>}, {pipeline_mode = #tpu.pipeline_mode<synchronous>, transform_indices = @transform_1, window_bounds = array<i64: 2, 128>}, {pipeline_mode = #tpu.pipeline_mode<synchronous>, transform_indices = @transform_2, window_bounds = array<i64: 1, 128>}, {pipeline_mode = #tpu.pipeline_mode<synchronous>, transform_indices = @transform_3, window_bounds = array<i64: 128, 8>}, {pipeline_mode = #tpu.pipeline_mode<synchronous>, transform_indices = @transform_4, window_bounds = array<i64: 1, 8>}, {transform_indices = @transform_5, window_bounds = array<i64: 8, 8>}]} {
    %c0 = arith.constant 0 : index
    %c0_0 = arith.constant 0 : index
    %0 = vector.load %arg1[%c0, %c0_0] : memref<8x2xf32, #tpu.memory_space<vmem>>, vector<8x1xf32>
    %c0_1 = arith.constant 0 : index
    %c1 = arith.constant 1 : index
    %1 = vector.load %arg1[%c0_1, %c1] : memref<8x2xf32, #tpu.memory_space<vmem>>, vector<8x1xf32>
    %c0_2 = arith.constant 0 : index
    %c0_3 = arith.constant 0 : index
    %2 = vector.load %arg2[%c0_2, %c0_3] : memref<2x128xf32, #tpu.memory_space<vmem>>, vector<1x128xf32>
    %3 = vector.broadcast %0 : vector<8x1xf32> to vector<8x128xf32>
    %4 = vector.broadcast %2 : vector<1x128xf32> to vector<8x128xf32>
    %5 = arith.mulf %3, %4 : vector<8x128xf32>
    %c1_4 = arith.constant 1 : index
    %c0_5 = arith.constant 0 : index
    %6 = vector.load %arg2[%c1_4, %c0_5] : memref<2x128xf32, #tpu.memory_space<vmem>>, vector<1x128xf32>
    %7 = vector.broadcast %1 : vector<8x1xf32> to vector<8x128xf32>
    %8 = vector.broadcast %6 : vector<1x128xf32> to vector<8x128xf32>
    %9 = arith.mulf %7, %8 : vector<8x128xf32>
    %10 = arith.addf %5, %9 : vector<8x128xf32>
    %c0_6 = arith.constant 0 : index
    %c0_7 = arith.constant 0 : index
    %11 = vector.load %arg3[%c0_6, %c0_7] : memref<1x128xf32, #tpu.memory_space<vmem>>, vector<1x128xf32>
    %12 = vector.broadcast %11 : vector<1x128xf32> to vector<8x128xf32>
    %13 = arith.addf %10, %12 : vector<8x128xf32>
    %14 = math.tanh %13 : vector<8x128xf32>
    %c0_8 = arith.constant 0 : index
    %c0_9 = arith.constant 0 : index
    %15 = vector.load %arg4[%c0_8, %c0_9] : memref<128x8xf32, #tpu.memory_space<vmem>>, vector<128x8xf32>
    %cst = arith.constant dense<0.000000e+00> : vector<8x8xf32>
    %16 = tpu.matmul %14, %15, %cst {dimension_numbers = #tpu.dot_dimension_numbers<[1], [0], [0], [1], [0, 0, 1, 1], [], []>} : vector<8x128xf32>, vector<128x8xf32>, vector<8x8xf32> -> vector<8x8xf32>
    %c0_10 = arith.constant 0 : index
    %c0_11 = arith.constant 0 : index
    %17 = vector.load %arg5[%c0_10, %c0_11] : memref<1x8xf32, #tpu.memory_space<vmem>>, vector<1x8xf32>
    %18 = vector.broadcast %17 : vector<1x8xf32> to vector<8x8xf32>
    %19 = arith.addf %16, %18 : vector<8x8xf32>
    %c0_12 = arith.constant 0 : index
    %c0_13 = arith.constant 0 : index
    %20 = vector.load %arg6[%c0_12, %c0_13] : memref<8x8xf32, #tpu.memory_space<vmem>>, vector<8x8xf32>
    tpu.vector_store %arg6[%c0_12, %c0_13], %19 {strides = array<i32>} : memref<8x8xf32, #tpu.memory_space<vmem>>, vector<8x8xf32>,
    return
  }
  func.func @transform_0(%arg0: i32) -> (i32, i32) {
    %c0_i32 = arith.constant 0 : i32
    %c0_i32_0 = arith.constant 0 : i32
    return %arg0, %c0_i32 : i32, i32
  }
  func.func @transform_1(%arg0: i32) -> (i32, i32) {
    %c0_i32 = arith.constant 0 : i32
    %c0_i32_0 = arith.constant 0 : i32
    %c0_i32_1 = arith.constant 0 : i32
    return %c0_i32, %c0_i32_0 : i32, i32
  }
  func.func @transform_2(%arg0: i32) -> (i32, i32) {
    %c0_i32 = arith.constant 0 : i32
    %c0_i32_0 = arith.constant 0 : i32
    %c0_i32_1 = arith.constant 0 : i32
    return %c0_i32, %c0_i32_0 : i32, i32
  }
  func.func @transform_3(%arg0: i32) -> (i32, i32) {
    %c0_i32 = arith.constant 0 : i32
    %c0_i32_0 = arith.constant 0 : i32
    %c0_i32_1 = arith.constant 0 : i32
    return %c0_i32, %c0_i32_0 : i32, i32
  }
  func.func @transform_4(%arg0: i32) -> (i32, i32) {
    %c0_i32 = arith.constant 0 : i32
    %c0_i32_0 = arith.constant 0 : i32
    %c0_i32_1 = arith.constant 0 : i32
    return %c0_i32, %c0_i32_0 : i32, i32
  }
  func.func @transform_5(%arg0: i32) -> (i32, i32) {
    %c0_i32 = arith.constant 0 : i32
    %c0_i32_0 = arith.constant 0 : i32
    return %arg0, %c0_i32 : i32, i32
  }
}

</mosaic_0001>

<llo_original>
// kernel: tpu_custom_call.1
$region0: #{tpu_custom_call.1}
  #allocation0 [shape = 'u32[]', space=smem, size = 0x4, offset = 0x4, fixed_abs, tag = 'smem constant byte address 0x4 - core index']
  #allocation1 [shape = 'u32[72,128]{1,0:T(1,128)}', space=vmem, size = 0x9000, scoped, tag = 'internal scratch']
  %s0 = inlined_call_operand.vmem [shape: f32[8,2], index: 0, kind: input, shape index: {}]
  %s1 = inlined_call_operand.vmem [shape: f32[2,128], index: 1, kind: input, shape index: {}]
  %s2 = inlined_call_operand.vmem [shape: f32[1,128], index: 2, kind: input, shape index: {}]
  %s3 = inlined_call_operand.vmem [shape: f32[128,8], index: 3, kind: input, shape index: {}]
  %s4 = inlined_call_operand.vmem [shape: f32[1,8], index: 4, kind: input, shape index: {}]
  %s5 = inlined_call_operand.hbm [shape: f32[8,8], index: 5, kind: output, shape index: {}]
  %s6 = sld [smem:[#allocation0]]
  $region30: #{tpu_custom_call.1} parent=0
    _
  %s8 = ssub.s32 1, %s6
  %s9 = scalar_select 0, %s8, %s6
  $region1: #{tpu_custom_call.1} parent=0
    #allocation2 [shape = 'u8[4096]{0}', space=vmem, size = 0x1000, scoped, tag = 'output window, operand 0, single buffered']
    #allocation3 [shape = 's32[1]{0}', space=sflag, size = 0x4, scoped, tag = 'scoped memory for tpu_custom_call.1']
    %10 = vsyncpa [#allocation3], 0
    // Predicated region
    $region2: #{tpu_custom_call.1} parent=1 // pred_check
      _
    $region3: #{tpu_custom_call.1} parent=1 // pred_check_branch
      %12 = sbr.rel (0) target = $region5
    $region4: #{tpu_custom_call.1} parent=1 // pred_region
      _
    $region5: #{tpu_custom_call.1} parent=1 // pred_fallthru
      _
    // Predicated region
    $region6: #{tpu_custom_call.1} parent=1 // pred_check
      _
    $region7: #{tpu_custom_call.1} parent=1 // pred_check_branch
      %14 = sbr.rel (0) target = $region9
    $region8: #{tpu_custom_call.1} parent=1 // pred_region
      _
    $region9: #{tpu_custom_call.1} parent=1 // pred_fallthru
      _
    // Predicated region
    $region10: #{tpu_custom_call.1} parent=1 // pred_check
      _
    $region11: #{tpu_custom_call.1} parent=1 // pred_check_branch
      %16 = sbr.rel (0) target = $region13
    $region12: #{tpu_custom_call.1} parent=1 // pred_region
      _
    $region13: #{tpu_custom_call.1} parent=1 // pred_fallthru
      _
    // Predicated region
    $region14: #{tpu_custom_call.1} parent=1 // pred_check
      _
    $region15: #{tpu_custom_call.1} parent=1 // pred_check_branch
      %18 = sbr.rel (0) target = $region17
    $region16: #{tpu_custom_call.1} parent=1 // pred_region
      _
    $region17: #{tpu_custom_call.1} parent=1 // pred_fallthru
      _
    // Predicated region
    $region18: #{tpu_custom_call.1} parent=1 // pred_check
      _
    $region19: #{tpu_custom_call.1} parent=1 // pred_check_branch
      %20 = sbr.rel (0) target = $region21
    $region20: #{tpu_custom_call.1} parent=1 // pred_region
      _
    $region21: #{tpu_custom_call.1} parent=1 // pred_fallthru
      _
    %v21 = vld [vmem:[%s0] sm:$0xff]
    %v22 = vld [vmem:[%s1] sm:$0x1]
    %24 = vset.pattern.permute.xlu0 0
    %25 = vperm.xlu0 %24, %v21
    %v26 = vpop.permute.xlu0 %25
    %v28 = vperm.slane %v22, 0
    %v29 = vmul.f32 %v26, %v28
    %v30 = vld [vmem:[%s1 + $0x1] sm:$0x1]
    %31 = vset.pattern.permute.xlu0 1
    %32 = vperm.xlu0 %31, %v21
    %v33 = vpop.permute.xlu0 %32
    %v35 = vperm.slane %v30, 0
    %v36 = vmul.f32 %v33, %v35
    %v37 = vadd.f32 %v29, %v36
    %v38 = vld [vmem:[%s2] sm:$0x1]
    %v40 = vperm.slane %v38, 0
    %v42 = vadd.f32 %v37, %v40
    %v43 = vtanh.pop %v42
    %v44 = vld [vmem:[%s3] sm:$0xff]
    %v45 = vld [vmem:[%s3 + $0x8] sm:$0xff]
    %v46 = vld [vmem:[%s3 + $0x10] sm:$0xff]
    %v47 = vld [vmem:[%s3 + $0x18] sm:$0xff]
    %v48 = vld [vmem:[%s3 + $0x20] sm:$0xff]
    %v49 = vld [vmem:[%s3 + $0x28] sm:$0xff]
    %v50 = vld [vmem:[%s3 + $0x30] sm:$0xff]
    %v51 = vld [vmem:[%s3 + $0x38] sm:$0xff]
    %v52 = vld [vmem:[%s3 + $0x40] sm:$0xff]
    %v53 = vld [vmem:[%s3 + $0x48] sm:$0xff]
    %v54 = vld [vmem:[%s3 + $0x50] sm:$0xff]
    %v55 = vld [vmem:[%s3 + $0x58] sm:$0xff]
    %v56 = vld [vmem:[%s3 + $0x60] sm:$0xff]
    %v57 = vld [vmem:[%s3 + $0x68] sm:$0xff]
    %v58 = vld [vmem:[%s3 + $0x70] sm:$0xff]
    %v59 = vld [vmem:[%s3 + $0x78] sm:$0xff]
    %v60 = vld [vmem:[%s4] sm:$0x1]
    %v62 = vperm.slane %v60, 0
    %64 = vmatpush.msra.mxu0 %v59
    %65 = vmatpush.msra.mxu0 %v58
    %66 = vmatpush.msra.mxu0 %v57
    %67 = vmatpush.msra.mxu0 %v56
    %68 = vmatpush.msra.mxu0 %v55
    %69 = vmatpush.msra.mxu0 %v54
    %70 = vmatpush.msra.mxu0 %v53
    %71 = vmatpush.msra.mxu0 %v52
    %72 = vmatpush.msra.mxu0 %v51
    %73 = vmatpush.msra.mxu0 %v50
    %74 = vmatpush.msra.mxu0 %v49
    %75 = vmatpush.msra.mxu0 %v48
    %76 = vmatpush.msra.mxu0 %v47
    %77 = vmatpush.msra.mxu0 %v46
    %78 = vmatpush.msra.mxu0 %v45
    %79 = vmatpush.msra.mxu0 %v44
    %80 = vmatmul.f32.gmra.mxu0 %v43
    %v81 = vpop.f32.mrf.mxu0
    %v82 = vadd.f32 %v62, %v81
    %83 = vdwg.mxu0
    %vm84 = vcmask 64512
    %85 = vst.msk [vmem:[#allocation2] sm:$0xff] %vm84, %v82
    // Predicated region
    $region22: #{tpu_custom_call.1} parent=1 // pred_check
      _
    $region23: #{tpu_custom_call.1} parent=1 // pred_check_branch
      %87 = sbr.rel (0) target = $region25
    $region24: #{tpu_custom_call.1} parent=1 // pred_region
      %89 = vsyncadd [#allocation3], 0
      %s91 = sshll.u32 [#allocation2], 4
      %s92 = int_to_ptr.vmem [resolvable:$true] %s91
      %s93 = sshll.u32 %s5, 4
      %s94 = int_to_ptr.hbm [resolvable:$true] %s93
      %96 = dma.vmem_to_hbm [thread:$0]  %s92, 128, %s94, [#allocation3]
    $region25: #{tpu_custom_call.1} parent=1 // pred_fallthru
      _
    // Predicated region
    $region26: #{tpu_custom_call.1} parent=1 // pred_check
      _
    $region27: #{tpu_custom_call.1} parent=1 // pred_check_branch
      %98 = sbr.rel (0) target = $region29
    $region28: #{tpu_custom_call.1} parent=1 // pred_region
      %100 = dma.done [#allocation3], 128
    $region29: #{tpu_custom_call.1} parent=1 // pred_fallthru
      _
    %101 = vsyncpa [#allocation3], 1

</llo_original>
